<compile_context>
chip_gen: v5e
topology: v5e:2x2
jax: 0.10.0
libtpu: 0.0.40
codegen_flags: <defaults>
</compile_context>

<pallas_src>
import functools

import jax
import jax.numpy as jnp
from jax.experimental import pallas as pl
from jax.experimental.pallas import tpu as pltpu

EPS = 2e-5
MOMENTUM = 0.1
_LANE = 128


# ---------------------------------------------------------------------------
# Tiling helpers
# ---------------------------------------------------------------------------
def _vmem_budget():
    """Return (vmem_limit_bytes, per-block byte budget) for this chip."""
    try:
        cap = int(pltpu.get_tpu_info().vmem_capacity_bytes)
    except Exception:          # conservative default (covers v7x's 64 MiB VMEM)
        cap = 64 * 1024 * 1024
    limit = min((cap * 3) // 4, 128 * 1024 * 1024)
    # Input and output blocks are double-buffered and the kernels compute in
    # f32, so keep a single block (counted at 4 B/elem) to ~1/8 of the limit.
    return limit, limit // 8


def _channel_tile_candidates(C):
    """Divisors of C usable as sublane-aligned channel tiles, descending."""
    cands = {C}                          # the full dim is always a legal block
    for d in range(8, C, 8):
        if C % d == 0:
            cands.add(d)
    return sorted(cands, reverse=True)


def _pick_with_parallel_pref(cands_desc, block_bytes_of, budget, C):
    """Largest candidate fitting `budget`; prefer >= 2 channel tiles when the
    resulting block is still >= 1 MiB (keeps both v7x TensorCores busy)."""
    fitting = [c for c in cands_desc if block_bytes_of(c) <= budget]
    if not fitting:
        return None
    multi = [c for c in fitting if C // c >= 2 and block_bytes_of(c) >= (1 << 20)]
    return multi[0] if multi else fitting[0]


def _largest_aligned_hw_tile(hw_p, max_elems):
    """Largest divisor of hw_p that is a multiple of 128 and <= max_elems."""
    best = _LANE
    k = hw_p // _LANE
    for d in range(1, k + 1):
        if k % d == 0 and d * _LANE <= max_elems:
            best = max(best, d * _LANE)
    return best


# ---------------------------------------------------------------------------
# Fused single-pass kernel: stats + normalize with the channel slab in VMEM.
# ---------------------------------------------------------------------------
def _fused_kernel(cats_ref,                               # scalar prefetch (SMEM)
                  x_ref, w_ref, b_ref, rm_ref, rv_ref,    # inputs
                  out_ref, nrm_ref, nrv_ref,              # outputs
                  *, eps, momentum, n_reduce, hw_valid, needs_mask):
    del cats_ref                                          # used only by index_maps
    x = x_ref[...].astype(jnp.float32)                    # (N, C_t, HW_p)
    inv_n = 1.0 / n_reduce

    # Padded lanes are zero, so the plain sum is exact without masking.
    s = jnp.sum(x, axis=2, keepdims=True)                 # (N, C_t, 1) lane reduce
    mean = jnp.sum(s, axis=0, keepdims=True) * inv_n      # (1, C_t, 1)

    centered = x - mean                                   # exact two-pass variance
    if needs_mask:
        lane = jax.lax.broadcasted_iota(jnp.int32, x.shape, 2)
        centered = jnp.where(lane < hw_valid, centered, 0.0)
    s2 = jnp.sum(centered * centered, axis=2, keepdims=True)
    var = jnp.sum(s2, axis=0, keepdims=True) * inv_n      # (1, C_t, 1), biased

    inv_std = jax.lax.rsqrt(var + eps)
    scale = w_ref[...] * inv_std                          # (1, C_t, 1)
    shift = b_ref[...] - mean * scale
    out_ref[...] = (x * scale + shift).astype(out_ref.dtype)

    # PyTorch updates running_var with the *unbiased* batch variance.
    bessel = n_reduce / max(n_reduce - 1.0, 1.0)
    nrm_ref[...] = (1.0 - momentum) * rm_ref[...] + momentum * mean[0]
    nrv_ref[...] = (1.0 - momentum) * rv_ref[...] + momentum * (var[0] * bessel)


# ---------------------------------------------------------------------------
# Streaming two-pass fallback (large activations).
# ---------------------------------------------------------------------------
def _stats_kernel(cats_ref,
                  x_ref, w_ref, b_ref, rm_ref, rv_ref,
                  scale_ref, shift_ref, nrm_ref, nrv_ref,
                  s1_acc, s2_acc,
                  *, eps, momentum, n_reduce, hw_valid, hw_t, needs_mask):
    """Pass 1: running-mean-centered sum / sum-of-squares reduction.

    Grid (c, n, l); reduction over (n, l).  Accumulating d = x - running_mean
    keeps E[d^2] - E[d]^2 numerically stable for activations with large means.
    """
    del cats_ref
    n = pl.program_id(1)
    l = pl.program_id(2)

    @pl.when(jnp.logical_and(n == 0, l == 0))
    def _init():
        s1_acc[...] = jnp.zeros_like(s1_acc)
        s2_acc[...] = jnp.zeros_like(s2_acc)

    x = x_ref[0].astype(jnp.float32)                      # (C_t, HW_t)
    d = x - rm_ref[...]                                   # center on running_mean
    if needs_mask:
        lane = jax.lax.broadcasted_iota(jnp.int32, d.shape, 1) + l * hw_t
        d = jnp.where(lane < hw_valid, d, 0.0)
    s1_acc[...] += jnp.sum(d, axis=1, keepdims=True)      # (C_t, 1)
    s2_acc[...] += jnp.sum(d * d, axis=1, keepdims=True)

    is_last = jnp.logical_and(n == pl.num_programs(1) - 1,
                              l == pl.num_programs(2) - 1)

    @pl.when(is_last)
    def _finalize():
        inv_n = 1.0 / n_reduce
        dmean = s1_acc[...] * inv_n
        mean = rm_ref[...] + dmean
        var = jnp.maximum(s2_acc[...] * inv_n - dmean * dmean, 0.0)  # biased
        inv_std = jax.lax.rsqrt(var + eps)

        scale = w_ref[0] * inv_std                        # (C_t, 1)
        scale_ref[...] = scale
        shift_ref[...] = b_ref[0] - mean * scale

        bessel = n_reduce / max(n_reduce - 1.0, 1.0)
        nrm_ref[...] = (1.0 - momentum) * rm_ref[...] + momentum * mean
        nrv_ref[...] = (1.0 - momentum) * rv_ref[...] + momentum * (var * bessel)


def _apply_kernel(x_ref, scale_ref, shift_ref, out_ref):
    """Pass 2: out = x * scale + shift (per-channel broadcast FMA)."""
    x = x_ref[...].astype(jnp.float32)                    # (1, C_t, HW_t)
    out_ref[...] = (x * scale_ref[...] + shift_ref[...]).astype(out_ref.dtype)


# ---------------------------------------------------------------------------
# Wrapper
# ---------------------------------------------------------------------------
def categorical_conditional_batch_norm(x, cats, weight, bias,
                                       running_mean, running_var,
                                       eps=EPS, momentum=MOMENTUM,
                                       force_two_pass=False):
    """x: (N, C, H, W) NCHW; cats: scalar int category; weight/bias: (num_cats, C).

    Returns (out, new_running_mean, new_running_var).
    """
    N, C, H, W = x.shape
    num_cats = weight.shape[0]
    HW = H * W
    n_reduce = float(N * HW)

    hw_p = HW if HW % _LANE == 0 else ((HW + _LANE - 1) // _LANE) * _LANE
    needs_mask = hw_p != HW

    # Free view only (no data movement): x stays in native NCHW order.
    x3 = x.reshape(N, C, HW)
    if needs_mask:
        # Zero-pad the lane axis to a multiple of 128 so every block is
        # lane-dense (unmasked vector stores).  Zeros do not perturb the plain
        # sums; centered terms are masked inside the kernels.
        x3 = jnp.pad(x3, ((0, 0), (0, 0), (0, hw_p - HW)))

    w3 = weight.astype(jnp.float32).reshape(num_cats, C, 1)
    b3 = bias.astype(jnp.float32).reshape(num_cats, C, 1)
    rm2 = running_mean.astype(jnp.float32).reshape(C, 1)
    rv2 = running_var.astype(jnp.float32).reshape(C, 1)
    cats_arr = jnp.asarray(cats, dtype=jnp.int32).reshape(1)

    vmem_limit, block_budget = _vmem_budget()
    c_cands = _channel_tile_candidates(C)

    fused_c_t = None
    if not force_two_pass:
        fused_c_t = _pick_with_parallel_pref(
            c_cands, lambda c: N * c * hw_p * 4, block_budget, C)

    if fused_c_t is not None:
        # ---------------- fused single-pass path ----------------
        c_t = fused_c_t
        n_c = C // c_t
        kernel = functools.partial(
            _fused_kernel, eps=float(eps), momentum=float(momentum),
            n_reduce=n_reduce, hw_valid=HW, needs_mask=needs_mask)

        c1_spec = pl.BlockSpec((c_t, 1), lambda c, cats: (c, 0))
        cond_spec = pl.BlockSpec((1, c_t, 1), lambda c, cats: (cats[0], c, 0))
        slab_spec = pl.BlockSpec((N, c_t, hw_p), lambda c, cats: (0, c, 0))

        grid_spec = pltpu.PrefetchScalarGridSpec(
            num_scalar_prefetch=1,
            grid=(n_c,),
            in_specs=[slab_spec, cond_spec, cond_spec, c1_spec, c1_spec],
            out_specs=(slab_spec, c1_spec, c1_spec),
        )
        out3, new_rm, new_rv = pl.pallas_call(
            kernel,
            grid_spec=grid_spec,
            out_shape=(jax.ShapeDtypeStruct((N, C, hw_p), x.dtype),
                       jax.ShapeDtypeStruct((C, 1), jnp.float32),
                       jax.ShapeDtypeStruct((C, 1), jnp.float32)),
            compiler_params=pltpu.CompilerParams(
                dimension_semantics=("parallel",),
                vmem_limit_bytes=vmem_limit),
        )(cats_arr, x3, w3, b3, rm2, rv2)
    else:
        # ---------------- streaming two-pass fallback ----------------
        fit = _pick_with_parallel_pref(
            c_cands, lambda c: c * hw_p * 4, block_budget, C)
        if fit is not None:
            c_t, hw_t = fit, hw_p            # full-HW, contiguous HBM blocks
        else:
            c_t = c_cands[-1]                # smallest channel tile, tile HW
            hw_t = _largest_aligned_hw_tile(
                hw_p, max(block_budget // (c_t * 4), _LANE))
        n_c = C // c_t
        n_hw = hw_p // hw_t

        stats_kernel = functools.partial(
            _stats_kernel, eps=float(eps), momentum=float(momentum),
            n_reduce=n_reduce, hw_valid=HW, hw_t=hw_t, needs_mask=needs_mask)

        c1_spec = pl.BlockSpec((c_t, 1), lambda c, n, l, cats: (c, 0))
        cond_spec = pl.BlockSpec((1, c_t, 1), lambda c, n, l, cats: (cats[0], c, 0))

        stats_grid = pltpu.PrefetchScalarGridSpec(
            num_scalar_prefetch=1,
            grid=(n_c, N, n_hw),
            in_specs=[
                pl.BlockSpec((1, c_t, hw_t), lambda c, n, l, cats: (n, c, l)),
                cond_spec,          # weight[cats]
                cond_spec,          # bias[cats]
                c1_spec,            # running_mean
                c1_spec,            # running_var
            ],
            out_specs=(c1_spec, c1_spec, c1_spec, c1_spec),
            scratch_shapes=[pltpu.VMEM((c_t, 1), jnp.float32),
                            pltpu.VMEM((c_t, 1), jnp.float32)],
        )
        scale, shift, new_rm, new_rv = pl.pallas_call(
            stats_kernel,
            grid_spec=stats_grid,
            out_shape=(jax.ShapeDtypeStruct((C, 1), jnp.float32),) * 4,
            compiler_params=pltpu.CompilerParams(
                dimension_semantics=("parallel", "arbitrary", "arbitrary"),
                vmem_limit_bytes=vmem_limit),
        )(cats_arr, x3, w3, b3, rm2, rv2)

        apply_grid = pltpu.PrefetchScalarGridSpec(
            num_scalar_prefetch=0,
            grid=(N, n_c, n_hw),
            in_specs=[
                pl.BlockSpec((1, c_t, hw_t), lambda n, c, l: (n, c, l)),
                pl.BlockSpec((c_t, 1), lambda n, c, l: (c, 0)),
                pl.BlockSpec((c_t, 1), lambda n, c, l: (c, 0)),
            ],
            out_specs=pl.BlockSpec((1, c_t, hw_t), lambda n, c, l: (n, c, l)),
        )
        out3 = pl.pallas_call(
            _apply_kernel,
            grid_spec=apply_grid,
            out_shape=jax.ShapeDtypeStruct((N, C, hw_p), x.dtype),
            compiler_params=pltpu.CompilerParams(
                # No reduction anywhere: every output block is unique.
                dimension_semantics=("parallel", "parallel", "parallel"),
                vmem_limit_bytes=vmem_limit),
        )(x3, scale, shift)

    if needs_mask:
        out3 = out3[:, :, :HW]
    out = out3.reshape(N, C, H, W)
    return out, new_rm.reshape(C), new_rv.reshape(C)


# ---------------------------------------------------------------------------
# Pure-JAX reference (torch.nn.functional.batch_norm training + conditional affine)
# ---------------------------------------------------------------------------
def _reference(x, cats, weight, bias, rm, rv, eps=EPS, momentum=MOMENTUM):
    mean = jnp.mean(x, axis=(0, 2, 3))
    var = jnp.var(x, axis=(0, 2, 3))                      # biased
    x_hat = (x - mean[None, :, None, None]) * jax.lax.rsqrt(
        var[None, :, None, None] + eps)
    out = x_hat * weight[cats][None, :, None, None] + bias[cats][None, :, None, None]
    n = x.shape[0] * x.shape[2] * x.shape[3]
    new_rm = (1.0 - momentum) * rm + momentum * mean
    new_rv = (1.0 - momentum) * rv + momentum * var * (n / max(n - 1.0, 1.0))
    return out, new_rm, new_rv


if __name__ == "__main__":
    key = jax.random.PRNGKey(0)

    def _run_case(N, C, H, W, num_cats, force_two_pass, seed_offset):
        ks = jax.random.split(jax.random.fold_in(key, seed_offset), 4)
        x = jax.random.normal(ks[0], (N, C, H, W), dtype=jnp.float32)
        # reset_parameters() sets weight=1, bias=0; use deterministic random
        # values to actually exercise the conditional affine path.
        weight = 1.0 + 0.1 * jax.random.normal(ks[1], (num_cats, C), jnp.float32)
        bias = 0.1 * jax.random.normal(ks[2], (num_cats, C), jnp.float32)
        rm = jnp.zeros((C,), jnp.float32)
        rv = jnp.ones((C,), jnp.float32)
        cats = int(jax.random.randint(ks[3], (), 0, num_cats))

        out, nrm, nrv = categorical_conditional_batch_norm(
            x, cats, weight, bias, rm, rv, force_two_pass=force_two_pass)
        jax.block_until_ready((out, nrm, nrv))

        ref_out, ref_rm, ref_rv = _reference(x, cats, weight, bias, rm, rv)
        assert out.shape == x.shape and out.dtype == x.dtype
        assert jnp.allclose(out, ref_out, atol=1e-4, rtol=1e-4)
        assert jnp.allclose(nrm, ref_rm, atol=1e-5, rtol=1e-5)
        assert jnp.allclose(nrv, ref_rv, atol=1e-5, rtol=1e-5)

    # Fused single-pass path, lane-aligned HW (primary small-shape case).
    _run_case(2, 4, 16, 16, 10, force_two_pass=False, seed_offset=0)
    # Streaming two-pass fallback exercised on the same shape.
    _run_case(2, 4, 16, 16, 10, force_two_pass=True, seed_offset=1)
    # Lane-unfriendly HW (5x5=25 -> padded to 128): fused path with masking.
    _run_case(2, 8, 5, 5, 6, force_two_pass=False, seed_offset=2)
    # Lane-unfriendly HW through the streaming path (masked accumulation).
    _run_case(2, 8, 5, 5, 6, force_two_pass=True, seed_offset=3)

    print("KERNEL_OK")
</pallas_src>

<mosaic_0001>
module attributes {stable_mosaic.version = 11 : i64} {
  func.func @_fused_kernel(%arg0: i32, %arg1: memref<1xi32, #tpu.memory_space<smem>>, %arg2: memref<2x4x256xf32, #tpu.memory_space<vmem>>, %arg3: memref<1x4x1xf32, #tpu.memory_space<vmem>>, %arg4: memref<1x4x1xf32, #tpu.memory_space<vmem>>, %arg5: memref<4x1xf32, #tpu.memory_space<vmem>>, %arg6: memref<4x1xf32, #tpu.memory_space<vmem>>, %arg7: memref<2x4x256xf32, #tpu.memory_space<vmem>>, %arg8: memref<4x1xf32, #tpu.memory_space<vmem>>, %arg9: memref<4x1xf32, #tpu.memory_space<vmem>>) attributes {dimension_semantics = [#tpu.dimension_semantics<parallel>], iteration_bounds = array<i64: 1>, scalar_prefetch = 1 : i64, scratch_operands = 0 : i64, tpu.core_type = #tpu.core_type<tc>, window_params = [{transform_indices = @transform_0, window_bounds = array<i64: 2, 4, 256>}, {transform_indices = @transform_1, window_bounds = array<i64: 1, 4, 1>}, {transform_indices = @transform_2, window_bounds = array<i64: 1, 4, 1>}, {transform_indices = @transform_3, window_bounds = array<i64: 4, 1>}, {transform_indices = @transform_4, window_bounds = array<i64: 4, 1>}, {transform_indices = @transform_5, window_bounds = array<i64: 2, 4, 256>}, {transform_indices = @transform_6, window_bounds = array<i64: 4, 1>}, {transform_indices = @transform_7, window_bounds = array<i64: 4, 1>}]} {
    %c0 = arith.constant 0 : index
    %c0_0 = arith.constant 0 : index
    %c0_1 = arith.constant 0 : index
    %0 = vector.load %arg2[%c0, %c0_0, %c0_1] : memref<2x4x256xf32, #tpu.memory_space<vmem>>, vector<2x4x256xf32>
    %cst = arith.constant dense<0.000000e+00> : vector<2x4xf32>
    %1 = vector.multi_reduction <add>, %0, %cst [2] : vector<2x4x256xf32> to vector<2x4xf32>
    %2 = vector.shape_cast %1 : vector<2x4xf32> to vector<2x4x1xf32>
    %cst_2 = arith.constant dense<0.000000e+00> : vector<4x1xf32>
    %3 = vector.multi_reduction <add>, %2, %cst_2 [0] : vector<2x4x1xf32> to vector<4x1xf32>
    %4 = vector.shape_cast %3 : vector<4x1xf32> to vector<1x4x1xf32>
    %cst_3 = arith.constant 0.001953125 : f32
    %5 = vector.broadcast %cst_3 : f32 to vector<1x4x1xf32>
    %6 = arith.mulf %4, %5 : vector<1x4x1xf32>
    %7 = vector.broadcast %6 : vector<1x4x1xf32> to vector<2x4x256xf32>
    %8 = arith.subf %0, %7 : vector<2x4x256xf32>
    %9 = arith.mulf %8, %8 : vector<2x4x256xf32>
    %cst_4 = arith.constant dense<0.000000e+00> : vector<2x4xf32>
    %10 = vector.multi_reduction <add>, %9, %cst_4 [2] : vector<2x4x256xf32> to vector<2x4xf32>
    %11 = vector.shape_cast %10 : vector<2x4xf32> to vector<2x4x1xf32>
    %cst_5 = arith.constant dense<0.000000e+00> : vector<4x1xf32>
    %12 = vector.multi_reduction <add>, %11, %cst_5 [0] : vector<2x4x1xf32> to vector<4x1xf32>
    %13 = vector.shape_cast %12 : vector<4x1xf32> to vector<1x4x1xf32>
    %cst_6 = arith.constant 0.001953125 : f32
    %14 = vector.broadcast %cst_6 : f32 to vector<1x4x1xf32>
    %15 = arith.mulf %13, %14 : vector<1x4x1xf32>
    %cst_7 = arith.constant 2.000000e-05 : f32
    %16 = vector.broadcast %cst_7 : f32 to vector<1x4x1xf32>
    %17 = arith.addf %15, %16 : vector<1x4x1xf32>
    %18 = math.rsqrt %17 : vector<1x4x1xf32>
    %c0_8 = arith.constant 0 : index
    %c0_9 = arith.constant 0 : index
    %c0_10 = arith.constant 0 : index
    %19 = vector.load %arg3[%c0_8, %c0_9, %c0_10] : memref<1x4x1xf32, #tpu.memory_space<vmem>>, vector<1x4x1xf32>
    %20 = arith.mulf %19, %18 : vector<1x4x1xf32>
    %c0_11 = arith.constant 0 : index
    %c0_12 = arith.constant 0 : index
    %c0_13 = arith.constant 0 : index
    %21 = vector.load %arg4[%c0_11, %c0_12, %c0_13] : memref<1x4x1xf32, #tpu.memory_space<vmem>>, vector<1x4x1xf32>
    %22 = arith.mulf %6, %20 : vector<1x4x1xf32>
    %23 = arith.subf %21, %22 : vector<1x4x1xf32>
    %24 = vector.broadcast %20 : vector<1x4x1xf32> to vector<2x4x256xf32>
    %25 = arith.mulf %0, %24 : vector<2x4x256xf32>
    %26 = vector.broadcast %23 : vector<1x4x1xf32> to vector<2x4x256xf32>
    %27 = arith.addf %25, %26 : vector<2x4x256xf32>
    %c0_14 = arith.constant 0 : index
    %c0_15 = arith.constant 0 : index
    %c0_16 = arith.constant 0 : index
    %28 = vector.load %arg7[%c0_14, %c0_15, %c0_16] : memref<2x4x256xf32, #tpu.memory_space<vmem>>, vector<2x4x256xf32>
    tpu.vector_store %arg7[%c0_14, %c0_15, %c0_16], %27 {strides = array<i32>} : memref<2x4x256xf32, #tpu.memory_space<vmem>>, vector<2x4x256xf32>,
    %c0_17 = arith.constant 0 : index
    %c0_18 = arith.constant 0 : index
    %29 = vector.load %arg5[%c0_17, %c0_18] : memref<4x1xf32, #tpu.memory_space<vmem>>, vector<4x1xf32>
    %cst_19 = arith.constant 0.899999976 : f32
    %30 = vector.broadcast %cst_19 : f32 to vector<4x1xf32>
    %31 = arith.mulf %30, %29 : vector<4x1xf32>
    %32 = vector.shape_cast %6 : vector<1x4x1xf32> to vector<4x1xf32>
    %cst_20 = arith.constant 1.000000e-01 : f32
    %33 = vector.broadcast %cst_20 : f32 to vector<4x1xf32>
    %34 = arith.mulf %33, %32 : vector<4x1xf32>
    %35 = arith.addf %31, %34 : vector<4x1xf32>
    %c0_21 = arith.constant 0 : index
    %c0_22 = arith.constant 0 : index
    %36 = vector.load %arg8[%c0_21, %c0_22] : memref<4x1xf32, #tpu.memory_space<vmem>>, vector<4x1xf32>
    tpu.vector_store %arg8[%c0_21, %c0_22], %35 {strides = array<i32>} : memref<4x1xf32, #tpu.memory_space<vmem>>, vector<4x1xf32>,
    %c0_23 = arith.constant 0 : index
    %c0_24 = arith.constant 0 : index
    %37 = vector.load %arg6[%c0_23, %c0_24] : memref<4x1xf32, #tpu.memory_space<vmem>>, vector<4x1xf32>
    %cst_25 = arith.constant 0.899999976 : f32
    %38 = vector.broadcast %cst_25 : f32 to vector<4x1xf32>
    %39 = arith.mulf %38, %37 : vector<4x1xf32>
    %40 = vector.shape_cast %15 : vector<1x4x1xf32> to vector<4x1xf32>
    %cst_26 = arith.constant 1.00195694 : f32
    %41 = vector.broadcast %cst_26 : f32 to vector<4x1xf32>
    %42 = arith.mulf %40, %41 : vector<4x1xf32>
    %cst_27 = arith.constant 1.000000e-01 : f32
    %43 = vector.broadcast %cst_27 : f32 to vector<4x1xf32>
    %44 = arith.mulf %43, %42 : vector<4x1xf32>
    %45 = arith.addf %39, %44 : vector<4x1xf32>
    %c0_28 = arith.constant 0 : index
    %c0_29 = arith.constant 0 : index
    %46 = vector.load %arg9[%c0_28, %c0_29] : memref<4x1xf32, #tpu.memory_space<vmem>>, vector<4x1xf32>
    tpu.vector_store %arg9[%c0_28, %c0_29], %45 {strides = array<i32>} : memref<4x1xf32, #tpu.memory_space<vmem>>, vector<4x1xf32>,
    return
  }
  func.func @transform_0(%arg0: i32, %arg1: memref<1xi32, #tpu.memory_space<smem>>) -> (i32, i32, i32) {
    %c0_i32 = arith.constant 0 : i32
    %c0_i32_0 = arith.constant 0 : i32
    %c0_i32_1 = arith.constant 0 : i32
    return %c0_i32, %arg0, %c0_i32_0 : i32, i32, i32
  }
  func.func @transform_1(%arg0: i32, %arg1: memref<1xi32, #tpu.memory_space<smem>>) -> (i32, i32, i32) {
    %c0 = arith.constant 0 : index
    %0 = memref.load %arg1[%c0] : memref<1xi32, #tpu.memory_space<smem>>
    %c0_i32 = arith.constant 0 : i32
    %c0_i32_0 = arith.constant 0 : i32
    return %0, %arg0, %c0_i32 : i32, i32, i32
  }
  func.func @transform_2(%arg0: i32, %arg1: memref<1xi32, #tpu.memory_space<smem>>) -> (i32, i32, i32) {
    %c0 = arith.constant 0 : index
    %0 = memref.load %arg1[%c0] : memref<1xi32, #tpu.memory_space<smem>>
    %c0_i32 = arith.constant 0 : i32
    %c0_i32_0 = arith.constant 0 : i32
    return %0, %arg0, %c0_i32 : i32, i32, i32
  }
  func.func @transform_3(%arg0: i32, %arg1: memref<1xi32, #tpu.memory_space<smem>>) -> (i32, i32) {
    %c0_i32 = arith.constant 0 : i32
    %c0_i32_0 = arith.constant 0 : i32
    return %arg0, %c0_i32 : i32, i32
  }
  func.func @transform_4(%arg0: i32, %arg1: memref<1xi32, #tpu.memory_space<smem>>) -> (i32, i32) {
    %c0_i32 = arith.constant 0 : i32
    %c0_i32_0 = arith.constant 0 : i32
    return %arg0, %c0_i32 : i32, i32
  }
  func.func @transform_5(%arg0: i32, %arg1: memref<1xi32, #tpu.memory_space<smem>>) -> (i32, i32, i32) {
    %c0_i32 = arith.constant 0 : i32
    %c0_i32_0 = arith.constant 0 : i32
    %c0_i32_1 = arith.constant 0 : i32
    return %c0_i32, %arg0, %c0_i32_0 : i32, i32, i32
  }
  func.func @transform_6(%arg0: i32, %arg1: memref<1xi32, #tpu.memory_space<smem>>) -> (i32, i32) {
    %c0_i32 = arith.constant 0 : i32
    %c0_i32_0 = arith.constant 0 : i32
    return %arg0, %c0_i32 : i32, i32
  }
  func.func @transform_7(%arg0: i32, %arg1: memref<1xi32, #tpu.memory_space<smem>>) -> (i32, i32) {
    %c0_i32 = arith.constant 0 : i32
    %c0_i32_0 = arith.constant 0 : i32
    return %arg0, %c0_i32 : i32, i32
  }
}

</mosaic_0001>

<llo_original>
// kernel: tpu_custom_call.1
$region0: #{tpu_custom_call.1}
  #allocation0 [shape = 'u32[]', space=smem, size = 0x4, offset = 0x4, fixed_abs, tag = 'smem constant byte address 0x4 - core index']
  #allocation1 [shape = 'u32[72,128]{1,0:T(1,128)}', space=vmem, size = 0x9000, scoped, tag = 'internal scratch']
  #allocation2 [shape = 's32[1]{0}', space=sflag, size = 0x4, scoped, tag = 'scoped memory for tpu_custom_call.1']
  #allocation3 [shape = 's32[1]{0:T(128)S(6)}', space=smem, size = 0x200, scoped, tag = 'prefetched SMEM operand 0']
  %s0 = inlined_call_operand.<no memory space> [shape: s32[1], index: 0, kind: input, shape index: {}]
  %s1 = inlined_call_operand.vmem [shape: f32[2,4,256], index: 1, kind: input, shape index: {}]
  %s2 = inlined_call_operand.vmem [shape: f32[10,4,1], index: 2, kind: input, shape index: {}]
  %s3 = inlined_call_operand.vmem [shape: f32[10,4,1], index: 3, kind: input, shape index: {}]
  %s4 = inlined_call_operand.vmem [shape: f32[4,1], index: 4, kind: input, shape index: {}]
  %s5 = inlined_call_operand.vmem [shape: f32[4,1], index: 5, kind: input, shape index: {}]
  %s6 = inlined_call_operand.hbm [shape: f32[2,4,256], index: 6, kind: output, shape index: {0}]
  %s7 = inlined_call_operand.vmem [shape: f32[4,1], index: 7, kind: output, shape index: {1}]
  %s8 = inlined_call_operand.vmem [shape: f32[4,1], index: 8, kind: output, shape index: {2}]
  %9 = xla_tuple %s6, %s7, %s8
  %s10 = sld [smem:[#allocation0]]
  $region46: #{tpu_custom_call.1} parent=0
    _
  %s12 = ssub.s32 1, %s10
  %s13 = scalar_select 0, %s12, %s10
  %14 = sst [smem:[#allocation3]] %s0
  $region1: #{tpu_custom_call.1} parent=0
    #allocation4 [shape = 'u8[8192]{0}', space=vmem, size = 0x2000, scoped, tag = 'output window, operand 0, single buffered']
    #allocation5 [shape = 's32[1]{0}', space=sflag, size = 0x4, scoped, tag = 'scoped memory for tpu_custom_call.1']
    %15 = vsyncpa [#allocation5], 0
    // Predicated region
    $region2: #{tpu_custom_call.1} parent=1 // pred_check
      _
    $region3: #{tpu_custom_call.1} parent=1 // pred_check_branch
      %17 = sbr.rel (0) target = $region5
    $region4: #{tpu_custom_call.1} parent=1 // pred_region
      _
    $region5: #{tpu_custom_call.1} parent=1 // pred_fallthru
      _
    // Predicated region
    $region6: #{tpu_custom_call.1} parent=1 // pred_check
      _
    $region7: #{tpu_custom_call.1} parent=1 // pred_check_branch
      %19 = sbr.rel (0) target = $region9
    $region8: #{tpu_custom_call.1} parent=1 // pred_region
      %s20 = sld [smem:[#allocation3]]
      %p21 = scmp.lt.s32.totalorder %s20, 9
      %s22 = scalar_select %p21, %s20, 9
      %s23 = smul.addr %s22, 4
      %s24 = scalar_lea.vmem %s2, %s23
      %s25 = sld [smem:[#allocation3]]
    $region9: #{tpu_custom_call.1} parent=1 // pred_fallthru
      _
    // Predicated region
    $region10: #{tpu_custom_call.1} parent=1 // pred_check
      _
    $region11: #{tpu_custom_call.1} parent=1 // pred_check_branch
      %27 = sbr.rel (0) target = $region13
    $region12: #{tpu_custom_call.1} parent=1 // pred_region
      %s28 = sld [smem:[#allocation3]]
      %p29 = scmp.lt.s32.totalorder %s28, 9
      %s30 = scalar_select %p29, %s28, 9
      %s31 = smul.addr %s30, 4
      %s32 = scalar_lea.vmem %s3, %s31
      %s33 = sld [smem:[#allocation3]]
    $region13: #{tpu_custom_call.1} parent=1 // pred_fallthru
      _
    // Predicated region
    $region14: #{tpu_custom_call.1} parent=1 // pred_check
      _
    $region15: #{tpu_custom_call.1} parent=1 // pred_check_branch
      %35 = sbr.rel (0) target = $region17
    $region16: #{tpu_custom_call.1} parent=1 // pred_region
      _
    $region17: #{tpu_custom_call.1} parent=1 // pred_fallthru
      _
    // Predicated region
    $region18: #{tpu_custom_call.1} parent=1 // pred_check
      _
    $region19: #{tpu_custom_call.1} parent=1 // pred_check_branch
      %37 = sbr.rel (0) target = $region21
    $region20: #{tpu_custom_call.1} parent=1 // pred_region
      _
    $region21: #{tpu_custom_call.1} parent=1 // pred_fallthru
      _
    %s38 = sld [smem:[#allocation3]]
    %p39 = scmp.lt.s32.totalorder %s38, 9
    %s40 = scalar_select %p39, %s38, 9
    %s41 = smul.addr %s40, 4
    %s42 = scalar_lea.vmem %s2, %s41
    %s43 = sld [smem:[#allocation3]]
    %p44 = scmp.lt.s32.totalorder %s43, 9
    %s45 = scalar_select %p44, %s43, 9
    %s46 = smul.addr %s45, 4
    %s47 = scalar_lea.vmem %s3, %s46
    %s48 = sld [smem:[#allocation3]]
    %p49 = scmp.lt.s32.totalorder %s48, 9
    %s50 = scalar_select %p49, %s48, 9
    %s51 = smul.addr %s50, 4
    %s52 = scalar_lea.vmem %s2, %s51
    %s53 = sld [smem:[#allocation3]]
    %s54 = sld [smem:[#allocation3]]
    %p55 = scmp.lt.s32.totalorder %s54, 9
    %s56 = scalar_select %p55, %s54, 9
    %s57 = smul.addr %s56, 4
    %s58 = scalar_lea.vmem %s3, %s57
    %s59 = sld [smem:[#allocation3]]
    %v60 = vld [vmem:[%s1] sm:$0xff]
    %v61 = vld [vmem:[%s1 + $0x8] sm:$0xff]
    %64 = vst [vmem:[#allocation1] ss:$2 sm:$0xff] %v60
    %v65 = vld.sshfl [vmem:[#allocation1] sm:$0xff pattern:$0x75316420]
    %v66 = vld.sshfl [vmem:[#allocation1 + $0x8] sm:$0xff pattern:$0x75316420]
    %s67 = scalar_lea.vmem [#allocation1], 16
    %68 = vst [vmem:[%s67] ss:$2 sm:$0xff] %v61
    %v69 = vld.sshfl [vmem:[#allocation1 + $0x10] sm:$0xff pattern:$0x75316420]
    %v70 = vld.sshfl [vmem:[#allocation1 + $0x18] sm:$0xff pattern:$0x75316420]
    %vm75 = vcmask 1043456
    %v76 = vsel %vm75, %v65, 0.0
    %v77 = vsel %vm75, %v66, 0.0
    %v78 = vadd.f32 %v76, %v77
    %79 = vadd.xlane.f32.xlu0 %v78
    %v80 = vpop.xlane.xlu0 %79
    %v81 = vsel %vm75, %v69, 0.0
    %v82 = vsel %vm75, %v70, 0.0
    %v83 = vadd.f32 %v81, %v82
    %84 = vadd.xlane.f32.xlu0 %v83
    %v85 = vpop.xlane.xlu0 %84
    %v86 = vsel %vm75, %v80, 0.0
    %v87 = vsel %vm75, %v85, 0.0
    %v88 = vadd.f32 %v86, %v87
    %v89 = vmul.f32 %v88, 0.001953125
    %v92 = vunpack.c.l.s4 839922192
    %v93 = vunpack.c.0.s8 %v92
    %v94 = vperm.slane %v89, %v93
    %v96 = vsub.f32 %v60, %v94
    %v97 = vsub.f32 %v61, %v94
    %v98 = vmul.f32 %v96, %v96
    %v99 = vmul.f32 %v97, %v97
    %102 = vst [vmem:[#allocation1] ss:$2 sm:$0xff] %v98
    %v103 = vld.sshfl [vmem:[#allocation1] sm:$0xff pattern:$0x75316420]
    %v104 = vld.sshfl [vmem:[#allocation1 + $0x8] sm:$0xff pattern:$0x75316420]
    %s105 = scalar_lea.vmem [#allocation1], 16
    %106 = vst [vmem:[%s105] ss:$2 sm:$0xff] %v99
    %v107 = vld.sshfl [vmem:[#allocation1 + $0x10] sm:$0xff pattern:$0x75316420]
    %v108 = vld.sshfl [vmem:[#allocation1 + $0x18] sm:$0xff pattern:$0x75316420]
    %v113 = vsel %vm75, %v103, 0.0
    %v114 = vsel %vm75, %v104, 0.0
    %v115 = vadd.f32 %v113, %v114
    %116 = vadd.xlane.f32.xlu0 %v115
    %v117 = vpop.xlane.xlu0 %116
    %v118 = vsel %vm75, %v107, 0.0
    %v119 = vsel %vm75, %v108, 0.0
    %v120 = vadd.f32 %v118, %v119
    %121 = vadd.xlane.f32.xlu0 %v120
    %v122 = vpop.xlane.xlu0 %121
    %v123 = vsel %vm75, %v117, 0.0
    %v124 = vsel %vm75, %v122, 0.0
    %v125 = vadd.f32 %v123, %v124
    %v126 = vmul.f32 %v125, 0.001953125
    %v127 = vadd.f32 %v126, 2e-05
    %v128 = vrsqrt.pop %v127
    %v129 = vmul.f32 %v128, %v127
    %v130 = vmul.f32 %v129, %v128
    %v131 = vmul.f32 0.5, %v130
    %v132 = vsub.f32 1.5, %v131
    %v133 = vmul.f32 %v128, %v132
    %vm134 = vweird.f32 %v127
    %vm135 = vweird.f32 %v128
    %vm136 = vmor %vm134, %vm135
    %v137 = vsel %vm136, %v128, %v133
    %v138 = vld [vmem:[%s52] sm:$0xf]
    %v139 = vmul.f32 %v138, %v137
    %v140 = vld [vmem:[%s58] sm:$0xf]
    %v141 = vmul.f32 %v89, %v139
    %v142 = vsub.f32 %v140, %v141
    %144 = vset.pattern.permute.xlu0 0
    %145 = vperm.xlu0 %144, %v139
    %v146 = vpop.permute.xlu0 %145
    %v148 = vunpack.c.l.s4 839922192
    %v149 = vunpack.c.0.s8 %v148
    %v150 = vperm.slane %v146, %v149
    %v152 = vmul.f32 %v60, %v150
    %v153 = vmul.f32 %v61, %v150
    %155 = vset.pattern.permute.xlu0 0
    %156 = vperm.xlu0 %155, %v142
    %v157 = vpop.permute.xlu0 %156
    %v159 = vunpack.c.l.s4 839922192
    %v160 = vunpack.c.0.s8 %v159
    %v161 = vperm.slane %v157, %v160
    %v163 = vadd.f32 %v152, %v161
    %v164 = vadd.f32 %v153, %v161
    %165 = vst [vmem:[#allocation4] sm:$0xff] %v163
    %166 = vst [vmem:[#allocation4 + $0x8] sm:$0xff] %v164
    %v167 = vld [vmem:[%s4] sm:$0xf]
    %v168 = vmul.f32 %v167, 0.9
    %v169 = vmul.f32 %v89, 0.1
    %v170 = vadd.f32 %v168, %v169
    %vm171 = vcmask 3072
    %172 = vst.msk [vmem:[%s7] sm:$0xf] %vm171, %v170
    %v173 = vld [vmem:[%s5] sm:$0xf]
    %v174 = vmul.f32 %v173, 0.9
    %v175 = vmul.f32 %v126, 1.0019569
    %v176 = vmul.f32 %v175, 0.1
    %v177 = vadd.f32 %v174, %v176
    %178 = vst.msk [vmem:[%s8] sm:$0xf] %vm171, %v177
    // Predicated region
    $region22: #{tpu_custom_call.1} parent=1 // pred_check
      _
    $region23: #{tpu_custom_call.1} parent=1 // pred_check_branch
      %180 = sbr.rel (0) target = $region25
    $region24: #{tpu_custom_call.1} parent=1 // pred_region
      %182 = vsyncadd [#allocation5], 0
      %s183 = sshll.u32 [#allocation4], 4
      %s184 = int_to_ptr.vmem [resolvable:$true] %s183
      %s185 = sshll.u32 %s6, 4
      %s186 = int_to_ptr.hbm [resolvable:$true] %s185
      %191 = dma.vmem_to_hbm [thread:$0]  %s184, 256, %s186, [#allocation5], 128, 128, 8
    $region25: #{tpu_custom_call.1} parent=1 // pred_fallthru
      _
    // Predicated region
    $region26: #{tpu_custom_call.1} parent=1 // pred_check
      _
    $region27: #{tpu_custom_call.1} parent=1 // pred_check_branch
      %193 = sbr.rel (0) target = $region29
    $region28: #{tpu_custom_call.1} parent=1 // pred_region
      _
    $region29: #{tpu_custom_call.1} parent=1 // pred_fallthru
      _
    // Predicated region
    $region30: #{tpu_custom_call.1} parent=1 // pred_check
      _
    $region31: #{tpu_custom_call.1} parent=1 // pred_check_branch
      %195 = sbr.rel (0) target = $region33
    $region32: #{tpu_custom_call.1} parent=1 // pred_region
      _
    $region33: #{tpu_custom_call.1} parent=1 // pred_fallthru
      _
    // Predicated region
    $region34: #{tpu_custom_call.1} parent=1 // pred_check
      _
    $region35: #{tpu_custom_call.1} parent=1 // pred_check_branch
      %197 = sbr.rel (0) target = $region37
    $region36: #{tpu_custom_call.1} parent=1 // pred_region
      %199 = dma.done [#allocation5], 256
    $region37: #{tpu_custom_call.1} parent=1 // pred_fallthru
      _
    // Predicated region
    $region38: #{tpu_custom_call.1} parent=1 // pred_check
      _
    $region39: #{tpu_custom_call.1} parent=1 // pred_check_branch
      %201 = sbr.rel (0) target = $region41
    $region40: #{tpu_custom_call.1} parent=1 // pred_region
      _
    $region41: #{tpu_custom_call.1} parent=1 // pred_fallthru
      _
    // Predicated region
    $region42: #{tpu_custom_call.1} parent=1 // pred_check
      _
    $region43: #{tpu_custom_call.1} parent=1 // pred_check_branch
      %203 = sbr.rel (0) target = $region45
    $region44: #{tpu_custom_call.1} parent=1 // pred_region
      _
    $region45: #{tpu_custom_call.1} parent=1 // pred_fallthru
      _
    %204 = vsyncpa [#allocation5], 1

</llo_original>
